<compile_context>
chip_gen: v5e
topology: v5e:2x2
jax: 0.10.0
libtpu: 0.0.40
codegen_flags: <defaults>
</compile_context>

<pallas_src>
import jax
import jax.numpy as jnp
from jax.experimental import pallas as pl
from jax.experimental.pallas import tpu as pltpu

IN_DIM = 256
PAD_DIM = 512
OUT_DIM = 32
MAX_TM = 2048  # rows of x per grid step (f32: 2 MiB/buffer; bf16: 1 MiB)


def _obs_proj_kernel(x_ref, w_ref, b_ref, o_ref):
    # x_ref : (TM, K)        VMEM
    # w_ref : (OUT_DIM, K)   VMEM  (first K input-columns of the weight)
    # b_ref : (1, OUT_DIM)   VMEM
    # o_ref : (TM, OUT_DIM)  VMEM
    acc = jax.lax.dot_general(
        x_ref[...],
        w_ref[...],
        dimension_numbers=(((1,), (1,)), ((), ())),   # x @ w.T on the MXU
        preferred_element_type=jnp.float32,
    )
    o_ref[...] = (acc + b_ref[...]).astype(o_ref.dtype)


def observation_projection(x, weight, bias):
    """x: (B, 256) or (B, 512); weight: (32, 512); bias: (32,) -> (B, 32)."""
    B, K = x.shape
    assert K in (IN_DIM, PAD_DIM)
    assert weight.shape == (OUT_DIM, PAD_DIM)

    # Keep x in its native dtype; make sure the matmul operands agree so
    # Mosaic lowering sees a single-dtype MXU op (no-op for the f32 test).
    if weight.dtype != x.dtype:
        weight = weight.astype(x.dtype)
    b2 = bias.reshape(1, OUT_DIM).astype(jnp.float32)

    # Batch tile: full B for small batches (block dim == array dim satisfies
    # the (8,128) rule), otherwise a multiple-of-8 tile with edge masking.
    tm = B if B <= MAX_TM else MAX_TM
    grid = (pl.cdiv(B, tm),)

    xsz = x.dtype.itemsize
    wsz = weight.dtype.itemsize
    cost = pl.CostEstimate(
        flops=2 * B * K * OUT_DIM,
        transcendentals=0,
        bytes_accessed=B * K * xsz + OUT_DIM * K * wsz + B * OUT_DIM * x.dtype.itemsize,
    )

    out = pl.pallas_call(
        _obs_proj_kernel,
        out_shape=jax.ShapeDtypeStruct((B, OUT_DIM), x.dtype),
        grid=grid,
        in_specs=[
            # x: tiled over batch, pipelined/double-buffered.
            pl.BlockSpec((tm, K), lambda i: (i, 0)),
            # weight: only the first K input-columns of the (32,512) parameter
            # are DMA'd (block index (0,0)); stays resident across the grid.
            pl.BlockSpec((OUT_DIM, K), lambda i: (0, 0)),
            # bias: tiny, resident.
            pl.BlockSpec((1, OUT_DIM), lambda i: (0, 0)),
        ],
        out_specs=pl.BlockSpec((tm, OUT_DIM), lambda i: (i, 0)),
        compiler_params=pltpu.CompilerParams(
            dimension_semantics=("parallel",),
        ),
        cost_estimate=cost,
    )(x, weight, b2)
    return out


if __name__ == "__main__":
    key = jax.random.PRNGKey(0)
    k_w, k_x = jax.random.split(key)

    # Deterministic synthetic parameters (matches nn.Parameter shapes).
    weight = jax.random.normal(k_w, (OUT_DIM, PAD_DIM), dtype=jnp.float32)  # randn(32, 512)
    bias = jnp.zeros((OUT_DIM,), dtype=jnp.float32)                          # zeros(32)

    # Small example input: (batch=2, 256)
    x = jax.random.normal(k_x, (2, IN_DIM), dtype=jnp.float32)

    y = observation_projection(x, weight, bias)
    y = jax.block_until_ready(y)

    # Reference check in plain JAX (same semantics as the torch forward).
    x_pad = jnp.concatenate(
        [x, jnp.zeros((2, PAD_DIM - IN_DIM), jnp.float32)], axis=-1
    )
    y_ref = x_pad @ weight.T + bias
    assert y.shape == (2, OUT_DIM)
    assert jnp.allclose(y, y_ref, atol=1e-4, rtol=1e-4)

    print("KERNEL_OK")
</pallas_src>

<mosaic_0001>
module attributes {stable_mosaic.version = 11 : i64} {
  func.func @_obs_proj_kernel(%arg0: i32, %arg1: memref<2x256xf32, #tpu.memory_space<vmem>>, %arg2: memref<32x256xf32, #tpu.memory_space<vmem>>, %arg3: memref<1x32xf32, #tpu.memory_space<vmem>>, %arg4: memref<2x32xf32, #tpu.memory_space<vmem>>) attributes {dimension_semantics = [#tpu.dimension_semantics<parallel>], iteration_bounds = array<i64: 1>, scalar_prefetch = 0 : i64, scratch_operands = 0 : i64, tpu.core_type = #tpu.core_type<tc>, window_params = [{transform_indices = @transform_0, window_bounds = array<i64: 2, 256>}, {transform_indices = @transform_1, window_bounds = array<i64: 32, 256>}, {pipeline_mode = #tpu.pipeline_mode<synchronous>, transform_indices = @transform_2, window_bounds = array<i64: 1, 32>}, {transform_indices = @transform_3, window_bounds = array<i64: 2, 32>}]} {
    %c0 = arith.constant 0 : index
    %c0_0 = arith.constant 0 : index
    %0 = vector.load %arg1[%c0, %c0_0] : memref<2x256xf32, #tpu.memory_space<vmem>>, vector<2x256xf32>
    %c0_1 = arith.constant 0 : index
    %c0_2 = arith.constant 0 : index
    %1 = vector.load %arg2[%c0_1, %c0_2] : memref<32x256xf32, #tpu.memory_space<vmem>>, vector<32x256xf32>
    %cst = arith.constant dense<0.000000e+00> : vector<2x32xf32>
    %2 = tpu.matmul %0, %1, %cst {dimension_numbers = #tpu.dot_dimension_numbers<[1], [1], [0], [0], [0, 0, 1, 0], [], []>} : vector<2x256xf32>, vector<32x256xf32>, vector<2x32xf32> -> vector<2x32xf32>
    %c0_3 = arith.constant 0 : index
    %c0_4 = arith.constant 0 : index
    %3 = vector.load %arg3[%c0_3, %c0_4] : memref<1x32xf32, #tpu.memory_space<vmem>>, vector<1x32xf32>
    %4 = vector.broadcast %3 : vector<1x32xf32> to vector<2x32xf32>
    %5 = arith.addf %2, %4 : vector<2x32xf32>
    %c0_5 = arith.constant 0 : index
    %c0_6 = arith.constant 0 : index
    %6 = vector.load %arg4[%c0_5, %c0_6] : memref<2x32xf32, #tpu.memory_space<vmem>>, vector<2x32xf32>
    tpu.vector_store %arg4[%c0_5, %c0_6], %5 {strides = array<i32>} : memref<2x32xf32, #tpu.memory_space<vmem>>, vector<2x32xf32>,
    return
  }
  func.func @transform_0(%arg0: i32) -> (i32, i32) {
    %c0_i32 = arith.constant 0 : i32
    %c0_i32_0 = arith.constant 0 : i32
    return %arg0, %c0_i32 : i32, i32
  }
  func.func @transform_1(%arg0: i32) -> (i32, i32) {
    %c0_i32 = arith.constant 0 : i32
    %c0_i32_0 = arith.constant 0 : i32
    %c0_i32_1 = arith.constant 0 : i32
    return %c0_i32, %c0_i32_0 : i32, i32
  }
  func.func @transform_2(%arg0: i32) -> (i32, i32) {
    %c0_i32 = arith.constant 0 : i32
    %c0_i32_0 = arith.constant 0 : i32
    %c0_i32_1 = arith.constant 0 : i32
    return %c0_i32, %c0_i32_0 : i32, i32
  }
  func.func @transform_3(%arg0: i32) -> (i32, i32) {
    %c0_i32 = arith.constant 0 : i32
    %c0_i32_0 = arith.constant 0 : i32
    return %arg0, %c0_i32 : i32, i32
  }
}

</mosaic_0001>

<llo_original>
// kernel: tpu_custom_call.1
$region0: #{tpu_custom_call.1}
  #allocation0 [shape = 'u32[]', space=smem, size = 0x4, offset = 0x4, fixed_abs, tag = 'smem constant byte address 0x4 - core index']
  #allocation1 [shape = 'u32[72,128]{1,0:T(1,128)}', space=vmem, size = 0x9000, scoped, tag = 'internal scratch']
  %s0 = inlined_call_operand.hbm [shape: f32[2,256], index: 0, kind: input, shape index: {}]
  %s1 = inlined_call_operand.hbm [shape: f32[32,512], index: 1, kind: input, shape index: {}]
  %s2 = inlined_call_operand.vmem [shape: f32[1,32], index: 2, kind: input, shape index: {}]
  %s3 = inlined_call_operand.hbm [shape: f32[2,32], index: 3, kind: output, shape index: {}]
  %s4 = sld [smem:[#allocation0]]
  $region30: #{tpu_custom_call.1} parent=0
    _
  %s6 = ssub.s32 1, %s4
  %s7 = scalar_select 0, %s6, %s4
  $region1: #{tpu_custom_call.1} parent=0
    #allocation2 [shape = 'u8[2048]{0}', space=vmem, size = 0x800, scoped, tag = 'input window, operand 0, single buffered']
    #allocation3 [shape = 's32[1]{0}', space=sflag, size = 0x4, scoped, tag = 'scoped memory for tpu_custom_call.1']
    #allocation4 [shape = 's32[1]{0}', space=sflag, size = 0x4, scoped, tag = 'scoped memory for tpu_custom_call.1']
    #allocation5 [shape = 'u8[32768]{0}', space=vmem, size = 0x8000, scoped, tag = 'input window, operand 1, single buffered']
    #allocation6 [shape = 's32[1]{0}', space=sflag, size = 0x4, scoped, tag = 'scoped memory for tpu_custom_call.1']
    #allocation7 [shape = 'u8[1024]{0}', space=vmem, size = 0x400, scoped, tag = 'output window, operand 0, single buffered']
    %8 = vsyncpa [#allocation3], 0
    %9 = vsyncpa [#allocation6], 0
    %10 = vsyncpa [#allocation4], 0
    // Predicated region
    $region2: #{tpu_custom_call.1} parent=1 // pred_check
      _
    $region3: #{tpu_custom_call.1} parent=1 // pred_check_branch
      %12 = sbr.rel (0) target = $region5
    $region4: #{tpu_custom_call.1} parent=1 // pred_region
      %14 = vsyncadd [#allocation3], 0
      %s16 = sshll.u32 %s0, 4
      %s17 = int_to_ptr.hbm [resolvable:$true] %s16
      %s18 = sshll.u32 [#allocation2], 4
      %s19 = int_to_ptr.vmem [resolvable:$true] %s18
      %21 = dma.hbm_to_vmem [thread:$0]  %s17, 64, %s19, [#allocation3]
    $region5: #{tpu_custom_call.1} parent=1 // pred_fallthru
      _
    // Predicated region
    $region6: #{tpu_custom_call.1} parent=1 // pred_check
      _
    $region7: #{tpu_custom_call.1} parent=1 // pred_check_branch
      %23 = sbr.rel (0) target = $region9
    $region8: #{tpu_custom_call.1} parent=1 // pred_region
      %25 = vsyncadd [#allocation6], 0
      %s26 = sshll.u32 %s1, 4
      %s27 = int_to_ptr.hbm [resolvable:$true] %s26
      %s28 = sshll.u32 [#allocation5], 4
      %s29 = int_to_ptr.vmem [resolvable:$true] %s28
      %34 = dma.hbm_to_vmem [thread:$0]  %s27, 1024, %s29, [#allocation6], 512, 256, 16
    $region9: #{tpu_custom_call.1} parent=1 // pred_fallthru
      _
    // Predicated region
    $region10: #{tpu_custom_call.1} parent=1 // pred_check
      _
    $region11: #{tpu_custom_call.1} parent=1 // pred_check_branch
      %36 = sbr.rel (0) target = $region13
    $region12: #{tpu_custom_call.1} parent=1 // pred_region
      _
    $region13: #{tpu_custom_call.1} parent=1 // pred_fallthru
      _
    // Predicated region
    $region14: #{tpu_custom_call.1} parent=1 // pred_check
      _
    $region15: #{tpu_custom_call.1} parent=1 // pred_check_branch
      %38 = sbr.rel (0) target = $region17
    $region16: #{tpu_custom_call.1} parent=1 // pred_region
      %40 = dma.done [#allocation3], 64
    $region17: #{tpu_custom_call.1} parent=1 // pred_fallthru
      _
    // Predicated region
    $region18: #{tpu_custom_call.1} parent=1 // pred_check
      _
    $region19: #{tpu_custom_call.1} parent=1 // pred_check_branch
      %42 = sbr.rel (0) target = $region21
    $region20: #{tpu_custom_call.1} parent=1 // pred_region
      %44 = dma.done [#allocation6], 1024
    $region21: #{tpu_custom_call.1} parent=1 // pred_fallthru
      _
    %v45 = vld [vmem:[#allocation2] sm:$0xf]
    %v46 = vld [vmem:[#allocation5] sm:$0xff]
    %v47 = vld [vmem:[#allocation5 + $0x8] sm:$0xff]
    %v48 = vld [vmem:[#allocation5 + $0x10] sm:$0xff]
    %v49 = vld [vmem:[#allocation5 + $0x18] sm:$0xff]
    %v50 = vld [vmem:[#allocation5 + $0x20] sm:$0xff]
    %v51 = vld [vmem:[#allocation5 + $0x28] sm:$0xff]
    %v52 = vld [vmem:[#allocation5 + $0x30] sm:$0xff]
    %v53 = vld [vmem:[#allocation5 + $0x38] sm:$0xff]
    %v54 = vld [vmem:[%s2] sm:$0x1]
    %v56 = vperm.slane %v54, 0
    %59 = vst [vmem:[#allocation1] ss:$4 sm:$0xff] %v45
    %v60 = vld.sshfl [vmem:[#allocation1] sm:$0xff pattern:$0x73625140]
    %v61 = vld.sshfl [vmem:[#allocation1 + $0x8] sm:$0xff pattern:$0x73625140]
    %64 = vmatpush.xpose.msra.mxu0 0.0
    %65 = vmatpush.xpose.msra.mxu0 0.0
    %66 = vmatpush.xpose.msra.mxu0 0.0
    %67 = vmatpush.xpose.msra.mxu0 0.0
    %68 = vmatpush.xpose.msra.mxu0 0.0
    %69 = vmatpush.xpose.msra.mxu0 0.0
    %70 = vmatpush.xpose.msra.mxu0 0.0
    %71 = vmatpush.xpose.msra.mxu0 0.0
    %72 = vmatpush.xpose.msra.mxu0 0.0
    %73 = vmatpush.xpose.msra.mxu0 0.0
    %74 = vmatpush.xpose.msra.mxu0 0.0
    %75 = vmatpush.xpose.msra.mxu0 0.0
    %76 = vmatpush.xpose.msra.mxu0 %v52
    %77 = vmatpush.xpose.msra.mxu0 %v50
    %78 = vmatpush.xpose.msra.mxu0 %v48
    %79 = vmatpush.xpose.msra.mxu0 %v46
    %80 = vmatmul.f32.gmra.mxu0 %v60
    %v81 = vpop.f32.mrf.mxu0
    %v82 = vadd.f32 %v56, %v81
    %83 = vdwg.mxu0
    %84 = vmatpush.xpose.msra.mxu0 0.0
    %85 = vmatpush.xpose.msra.mxu0 0.0
    %86 = vmatpush.xpose.msra.mxu0 0.0
    %87 = vmatpush.xpose.msra.mxu0 0.0
    %88 = vmatpush.xpose.msra.mxu0 0.0
    %89 = vmatpush.xpose.msra.mxu0 0.0
    %90 = vmatpush.xpose.msra.mxu0 0.0
    %91 = vmatpush.xpose.msra.mxu0 0.0
    %92 = vmatpush.xpose.msra.mxu0 0.0
    %93 = vmatpush.xpose.msra.mxu0 0.0
    %94 = vmatpush.xpose.msra.mxu0 0.0
    %95 = vmatpush.xpose.msra.mxu0 0.0
    %96 = vmatpush.xpose.msra.mxu0 %v53
    %97 = vmatpush.xpose.msra.mxu0 %v51
    %98 = vmatpush.xpose.msra.mxu0 %v49
    %99 = vmatpush.xpose.msra.mxu0 %v47
    %100 = vmatmul.f32.gmra.mxu0 %v61
    %v101 = vpop.f32.mrf.mxu0
    %v102 = vadd.f32 %v82, %v101
    %103 = vdwg.mxu0
    %vm104 = vcmask 254976
    %105 = vst.msk [vmem:[#allocation7] sm:$0x3] %vm104, %v102
    // Predicated region
    $region22: #{tpu_custom_call.1} parent=1 // pred_check
      _
    $region23: #{tpu_custom_call.1} parent=1 // pred_check_branch
      %107 = sbr.rel (0) target = $region25
    $region24: #{tpu_custom_call.1} parent=1 // pred_region
      %109 = vsyncadd [#allocation4], 0
      %s111 = sshll.u32 [#allocation7], 4
      %s112 = int_to_ptr.vmem [resolvable:$true] %s111
      %s113 = sshll.u32 %s3, 4
      %s114 = int_to_ptr.hbm [resolvable:$true] %s113
      %116 = dma.vmem_to_hbm [thread:$0]  %s112, 32, %s114, [#allocation4]
    $region25: #{tpu_custom_call.1} parent=1 // pred_fallthru
      _
    // Predicated region
    $region26: #{tpu_custom_call.1} parent=1 // pred_check
      _
    $region27: #{tpu_custom_call.1} parent=1 // pred_check_branch
      %118 = sbr.rel (0) target = $region29
    $region28: #{tpu_custom_call.1} parent=1 // pred_region
      %120 = dma.done [#allocation4], 32
    $region29: #{tpu_custom_call.1} parent=1 // pred_fallthru
      _
    %121 = vsyncpa [#allocation3], 1
    %122 = vsyncpa [#allocation6], 1
    %123 = vsyncpa [#allocation4], 1

</llo_original>
